<compile_context>
chip_gen: v5e
topology: v5e:2x2
jax: 0.10.0
libtpu: 0.0.40
codegen_flags: <defaults>
</compile_context>

<pallas_src>
import jax
import jax.numpy as jnp
from jax.experimental import pallas as pl
from jax.experimental.pallas import tpu as pltpu

HIDDEN = 128
LANE = 128


def _round_up(n, m):
    return (n + m - 1) // m * m


def _softplus(v):
    # torch.nn.Softplus(beta=1, threshold=20): exactly linear above the threshold;
    # below it use the stable max + log1p(exp(-|v|)) form (never exponentiates a
    # large value, so no inf/NaN hazard under differentiation).
    return jnp.where(v > 20.0, v, jnp.maximum(v, 0.0) + jnp.log1p(jnp.exp(-jnp.abs(v))))


def sparsenet_kernel(x_ref,
                     w1_ref, b1_ref,
                     w2_ref, b2_ref,
                     w3_ref, b3_ref,
                     w4_ref, b4_ref,
                     o_ref):
    # All matmuls: bf16 operands on the MXU, f32 accumulation; bias add + softplus in f32.
    h = jnp.dot(x_ref[...], w1_ref[...], preferred_element_type=jnp.float32) + b1_ref[...]
    h = _softplus(h)
    h = jnp.dot(h.astype(jnp.bfloat16), w2_ref[...],
                preferred_element_type=jnp.float32) + b2_ref[...]
    h = _softplus(h)
    h = jnp.dot(h.astype(jnp.bfloat16), w3_ref[...],
                preferred_element_type=jnp.float32) + b3_ref[...]
    h = _softplus(h)
    o_ref[...] = (jnp.dot(h.astype(jnp.bfloat16), w4_ref[...],
                          preferred_element_type=jnp.float32) + b4_ref[...])


def init_params(key, d, ny, hidden=HIDDEN):
    """Deterministic init mimicking nn.Linear default (uniform(-1/sqrt(in), 1/sqrt(in))).
    Weights stored transposed (in, out) relative to PyTorch's (out, in), fp32."""
    dims = [(d * ny, hidden), (hidden, hidden), (hidden, hidden), (hidden, ny)]
    params = {}
    for i, (fan_in, fan_out) in enumerate(dims, start=1):
        key, kw, kb = jax.random.split(key, 3)
        bound = 1.0 / jnp.sqrt(jnp.float32(fan_in))
        params[f"w{i}"] = jax.random.uniform(
            kw, (fan_in, fan_out), jnp.float32, -bound, bound)
        params[f"b{i}"] = jax.random.uniform(
            kb, (1, fan_out), jnp.float32, -bound, bound)
    return params


def prepare_params(params):
    """One-time prep: pad the input/output feature dims to 128 lanes (zero rows/cols,
    math-preserving) and cast weights to bf16.  Biases stay fp32 for the f32 add."""
    in_dim = params["w1"].shape[0]
    ny = params["w4"].shape[1]
    in_pad = _round_up(in_dim, LANE)
    ny_pad = _round_up(ny, LANE)

    w1 = jnp.zeros((in_pad, HIDDEN), jnp.float32).at[:in_dim, :].set(params["w1"])
    w4 = jnp.zeros((HIDDEN, ny_pad), jnp.float32).at[:, :ny].set(params["w4"])
    b4 = jnp.zeros((1, ny_pad), jnp.float32).at[:, :ny].set(params["b4"])

    return dict(
        w1=w1.astype(jnp.bfloat16), b1=params["b1"].astype(jnp.float32),
        w2=params["w2"].astype(jnp.bfloat16), b2=params["b2"].astype(jnp.float32),
        w3=params["w3"].astype(jnp.bfloat16), b3=params["b3"].astype(jnp.float32),
        w4=w4.astype(jnp.bfloat16), b4=b4,
        in_dim=in_dim, in_pad=in_pad, ny=ny, ny_pad=ny_pad,
    )


def sparsenet_apply_batched(xb, prepared, tile_b=256):
    """Batched forward: xb (B, d*ny) -> (B, ny).  Grid over batch tiles; weights are
    full-block (VMEM resident per tile).  tile_b=256 fills the v6e/v7x MXU; use 128 on v5e."""
    in_dim, in_pad = prepared["in_dim"], prepared["in_pad"]
    ny, ny_pad = prepared["ny"], prepared["ny_pad"]
    B = xb.shape[0]

    tile_b = min(tile_b, max(8, _round_up(B, 8)))
    b_pad = _round_up(B, tile_b)

    x_padded = jnp.zeros((b_pad, in_pad), jnp.bfloat16)
    x_padded = x_padded.at[:B, :in_dim].set(xb.astype(jnp.bfloat16))

    weight_args = (prepared["w1"], prepared["b1"], prepared["w2"], prepared["b2"],
                   prepared["w3"], prepared["b3"], prepared["w4"], prepared["b4"])
    full = lambda a: pl.BlockSpec(a.shape, lambda i: (0,) * a.ndim)

    out = pl.pallas_call(
        sparsenet_kernel,
        out_shape=jax.ShapeDtypeStruct((b_pad, ny_pad), jnp.float32),
        grid=(b_pad // tile_b,),
        in_specs=[pl.BlockSpec((tile_b, in_pad), lambda i: (i, 0))]
                 + [full(a) for a in weight_args],
        out_specs=pl.BlockSpec((tile_b, ny_pad), lambda i: (i, 0)),
        compiler_params=pltpu.CompilerParams(dimension_semantics=("parallel",)),
    )(x_padded, *weight_args)

    return out[:B, :ny]


def sparsenet_forward(x, prepared):
    """Exact SparseNet.forward semantics: x.view(1, -1) -> MLP -> (1, ny)."""
    return sparsenet_apply_batched(x.reshape(1, -1), prepared)


if __name__ == "__main__":
    d, ny = 4, 8
    key = jax.random.PRNGKey(0)
    kx, kb, kp = jax.random.split(key, 3)

    params = init_params(kp, d, ny)
    prepared = prepare_params(params)

    # 1) Exact module semantics: a single input viewed as (1, d*ny).
    x_single = jax.random.normal(kx, (d, ny), jnp.float32)
    out1 = jax.block_until_ready(sparsenet_forward(x_single, prepared))
    assert out1.shape == (1, ny)

    # 2) Batched evaluation (the adversarial-search use case): B samples in one call.
    B = 256
    xb = jax.random.normal(kb, (B, d * ny), jnp.float32)
    out_b = jax.block_until_ready(sparsenet_apply_batched(xb, prepared))
    assert out_b.shape == (B, ny)

    # Pure-JAX reference of the same bf16-operand / f32-accumulate math.
    def ref_forward(xr):
        n = xr.shape[0]
        h = jnp.zeros((n, prepared["in_pad"]), jnp.bfloat16)
        h = h.at[:, :d * ny].set(xr.astype(jnp.bfloat16))
        for i in (1, 2, 3):
            h = _softplus(jnp.dot(h, prepared[f"w{i}"],
                                  preferred_element_type=jnp.float32) + prepared[f"b{i}"])
            h = h.astype(jnp.bfloat16)
        o = jnp.dot(h, prepared["w4"], preferred_element_type=jnp.float32) + prepared["b4"]
        return o[:, :ny]

    ref1 = ref_forward(x_single.reshape(1, -1))
    refb = ref_forward(xb)
    assert jnp.allclose(out1, ref1, atol=1e-2, rtol=1e-2)
    assert jnp.allclose(out_b, refb, atol=1e-2, rtol=1e-2)

    print("KERNEL_OK")
</pallas_src>

<mosaic_0001>
module attributes {stable_mosaic.version = 11 : i64} {
  func.func @sparsenet_kernel(%arg0: i32, %arg1: memref<8x128xbf16, #tpu.memory_space<vmem>>, %arg2: memref<128x128xbf16, #tpu.memory_space<vmem>>, %arg3: memref<1x128xf32, #tpu.memory_space<vmem>>, %arg4: memref<128x128xbf16, #tpu.memory_space<vmem>>, %arg5: memref<1x128xf32, #tpu.memory_space<vmem>>, %arg6: memref<128x128xbf16, #tpu.memory_space<vmem>>, %arg7: memref<1x128xf32, #tpu.memory_space<vmem>>, %arg8: memref<128x128xbf16, #tpu.memory_space<vmem>>, %arg9: memref<1x128xf32, #tpu.memory_space<vmem>>, %arg10: memref<8x128xf32, #tpu.memory_space<vmem>>) attributes {dimension_semantics = [#tpu.dimension_semantics<parallel>], iteration_bounds = array<i64: 1>, scalar_prefetch = 0 : i64, scratch_operands = 0 : i64, tpu.core_type = #tpu.core_type<tc>, window_params = [{transform_indices = @transform_0, window_bounds = array<i64: 8, 128>}, {pipeline_mode = #tpu.pipeline_mode<synchronous>, transform_indices = @transform_1, window_bounds = array<i64: 128, 128>}, {pipeline_mode = #tpu.pipeline_mode<synchronous>, transform_indices = @transform_2, window_bounds = array<i64: 1, 128>}, {pipeline_mode = #tpu.pipeline_mode<synchronous>, transform_indices = @transform_3, window_bounds = array<i64: 128, 128>}, {pipeline_mode = #tpu.pipeline_mode<synchronous>, transform_indices = @transform_4, window_bounds = array<i64: 1, 128>}, {pipeline_mode = #tpu.pipeline_mode<synchronous>, transform_indices = @transform_5, window_bounds = array<i64: 128, 128>}, {pipeline_mode = #tpu.pipeline_mode<synchronous>, transform_indices = @transform_6, window_bounds = array<i64: 1, 128>}, {pipeline_mode = #tpu.pipeline_mode<synchronous>, transform_indices = @transform_7, window_bounds = array<i64: 128, 128>}, {pipeline_mode = #tpu.pipeline_mode<synchronous>, transform_indices = @transform_8, window_bounds = array<i64: 1, 128>}, {transform_indices = @transform_9, window_bounds = array<i64: 8, 128>}]} {
    %c0 = arith.constant 0 : index
    %c0_0 = arith.constant 0 : index
    %0 = vector.load %arg1[%c0, %c0_0] : memref<8x128xbf16, #tpu.memory_space<vmem>>, vector<8x128xbf16>
    %c0_1 = arith.constant 0 : index
    %c0_2 = arith.constant 0 : index
    %1 = vector.load %arg2[%c0_1, %c0_2] : memref<128x128xbf16, #tpu.memory_space<vmem>>, vector<128x128xbf16>
    %cst = arith.constant dense<0.000000e+00> : vector<8x128xf32>
    %2 = tpu.matmul %0, %1, %cst {dimension_numbers = #tpu.dot_dimension_numbers<[1], [0], [0], [1], [0, 0, 1, 1], [], []>} : vector<8x128xbf16>, vector<128x128xbf16>, vector<8x128xf32> -> vector<8x128xf32>
    %c0_3 = arith.constant 0 : index
    %c0_4 = arith.constant 0 : index
    %3 = vector.load %arg3[%c0_3, %c0_4] : memref<1x128xf32, #tpu.memory_space<vmem>>, vector<1x128xf32>
    %4 = vector.broadcast %3 : vector<1x128xf32> to vector<8x128xf32>
    %5 = arith.addf %2, %4 : vector<8x128xf32>
    %cst_5 = arith.constant 2.000000e+01 : f32
    %6 = vector.broadcast %cst_5 : f32 to vector<8x128xf32>
    %7 = arith.cmpf ogt, %5, %6 : vector<8x128xf32>
    %cst_6 = arith.constant 0.000000e+00 : f32
    %8 = vector.broadcast %cst_6 : f32 to vector<8x128xf32>
    %9 = arith.maximumf %5, %8 : vector<8x128xf32>
    %10 = math.absf %5 : vector<8x128xf32>
    %cst_7 = arith.constant 0.000000e+00 : f32
    %11 = vector.broadcast %cst_7 : f32 to vector<8x128xf32>
    %12 = arith.subf %11, %10 : vector<8x128xf32>
    %13 = math.exp %12 : vector<8x128xf32>
    %14 = math.log1p %13 : vector<8x128xf32>
    %15 = arith.addf %9, %14 : vector<8x128xf32>
    %16 = arith.select %7, %5, %15 : vector<8x128xi1>, vector<8x128xf32>
    %17 = arith.truncf %16 : vector<8x128xf32> to vector<8x128xbf16>
    %c0_8 = arith.constant 0 : index
    %c0_9 = arith.constant 0 : index
    %18 = vector.load %arg4[%c0_8, %c0_9] : memref<128x128xbf16, #tpu.memory_space<vmem>>, vector<128x128xbf16>
    %cst_10 = arith.constant dense<0.000000e+00> : vector<8x128xf32>
    %19 = tpu.matmul %17, %18, %cst_10 {dimension_numbers = #tpu.dot_dimension_numbers<[1], [0], [0], [1], [0, 0, 1, 1], [], []>} : vector<8x128xbf16>, vector<128x128xbf16>, vector<8x128xf32> -> vector<8x128xf32>
    %c0_11 = arith.constant 0 : index
    %c0_12 = arith.constant 0 : index
    %20 = vector.load %arg5[%c0_11, %c0_12] : memref<1x128xf32, #tpu.memory_space<vmem>>, vector<1x128xf32>
    %21 = vector.broadcast %20 : vector<1x128xf32> to vector<8x128xf32>
    %22 = arith.addf %19, %21 : vector<8x128xf32>
    %cst_13 = arith.constant 2.000000e+01 : f32
    %23 = vector.broadcast %cst_13 : f32 to vector<8x128xf32>
    %24 = arith.cmpf ogt, %22, %23 : vector<8x128xf32>
    %cst_14 = arith.constant 0.000000e+00 : f32
    %25 = vector.broadcast %cst_14 : f32 to vector<8x128xf32>
    %26 = arith.maximumf %22, %25 : vector<8x128xf32>
    %27 = math.absf %22 : vector<8x128xf32>
    %cst_15 = arith.constant 0.000000e+00 : f32
    %28 = vector.broadcast %cst_15 : f32 to vector<8x128xf32>
    %29 = arith.subf %28, %27 : vector<8x128xf32>
    %30 = math.exp %29 : vector<8x128xf32>
    %31 = math.log1p %30 : vector<8x128xf32>
    %32 = arith.addf %26, %31 : vector<8x128xf32>
    %33 = arith.select %24, %22, %32 : vector<8x128xi1>, vector<8x128xf32>
    %34 = arith.truncf %33 : vector<8x128xf32> to vector<8x128xbf16>
    %c0_16 = arith.constant 0 : index
    %c0_17 = arith.constant 0 : index
    %35 = vector.load %arg6[%c0_16, %c0_17] : memref<128x128xbf16, #tpu.memory_space<vmem>>, vector<128x128xbf16>
    %cst_18 = arith.constant dense<0.000000e+00> : vector<8x128xf32>
    %36 = tpu.matmul %34, %35, %cst_18 {dimension_numbers = #tpu.dot_dimension_numbers<[1], [0], [0], [1], [0, 0, 1, 1], [], []>} : vector<8x128xbf16>, vector<128x128xbf16>, vector<8x128xf32> -> vector<8x128xf32>
    %c0_19 = arith.constant 0 : index
    %c0_20 = arith.constant 0 : index
    %37 = vector.load %arg7[%c0_19, %c0_20] : memref<1x128xf32, #tpu.memory_space<vmem>>, vector<1x128xf32>
    %38 = vector.broadcast %37 : vector<1x128xf32> to vector<8x128xf32>
    %39 = arith.addf %36, %38 : vector<8x128xf32>
    %cst_21 = arith.constant 2.000000e+01 : f32
    %40 = vector.broadcast %cst_21 : f32 to vector<8x128xf32>
    %41 = arith.cmpf ogt, %39, %40 : vector<8x128xf32>
    %cst_22 = arith.constant 0.000000e+00 : f32
    %42 = vector.broadcast %cst_22 : f32 to vector<8x128xf32>
    %43 = arith.maximumf %39, %42 : vector<8x128xf32>
    %44 = math.absf %39 : vector<8x128xf32>
    %cst_23 = arith.constant 0.000000e+00 : f32
    %45 = vector.broadcast %cst_23 : f32 to vector<8x128xf32>
    %46 = arith.subf %45, %44 : vector<8x128xf32>
    %47 = math.exp %46 : vector<8x128xf32>
    %48 = math.log1p %47 : vector<8x128xf32>
    %49 = arith.addf %43, %48 : vector<8x128xf32>
    %50 = arith.select %41, %39, %49 : vector<8x128xi1>, vector<8x128xf32>
    %51 = arith.truncf %50 : vector<8x128xf32> to vector<8x128xbf16>
    %c0_24 = arith.constant 0 : index
    %c0_25 = arith.constant 0 : index
    %52 = vector.load %arg8[%c0_24, %c0_25] : memref<128x128xbf16, #tpu.memory_space<vmem>>, vector<128x128xbf16>
    %cst_26 = arith.constant dense<0.000000e+00> : vector<8x128xf32>
    %53 = tpu.matmul %51, %52, %cst_26 {dimension_numbers = #tpu.dot_dimension_numbers<[1], [0], [0], [1], [0, 0, 1, 1], [], []>} : vector<8x128xbf16>, vector<128x128xbf16>, vector<8x128xf32> -> vector<8x128xf32>
    %c0_27 = arith.constant 0 : index
    %c0_28 = arith.constant 0 : index
    %54 = vector.load %arg9[%c0_27, %c0_28] : memref<1x128xf32, #tpu.memory_space<vmem>>, vector<1x128xf32>
    %55 = vector.broadcast %54 : vector<1x128xf32> to vector<8x128xf32>
    %56 = arith.addf %53, %55 : vector<8x128xf32>
    %c0_29 = arith.constant 0 : index
    %c0_30 = arith.constant 0 : index
    %57 = vector.load %arg10[%c0_29, %c0_30] : memref<8x128xf32, #tpu.memory_space<vmem>>, vector<8x128xf32>
    tpu.vector_store %arg10[%c0_29, %c0_30], %56 {strides = array<i32>} : memref<8x128xf32, #tpu.memory_space<vmem>>, vector<8x128xf32>,
    return
  }
  func.func @transform_0(%arg0: i32) -> (i32, i32) {
    %c0_i32 = arith.constant 0 : i32
    %c0_i32_0 = arith.constant 0 : i32
    return %arg0, %c0_i32 : i32, i32
  }
  func.func @transform_1(%arg0: i32) -> (i32, i32) {
    %c0_i32 = arith.constant 0 : i32
    %c0_i32_0 = arith.constant 0 : i32
    %c0_i32_1 = arith.constant 0 : i32
    return %c0_i32, %c0_i32_0 : i32, i32
  }
  func.func @transform_2(%arg0: i32) -> (i32, i32) {
    %c0_i32 = arith.constant 0 : i32
    %c0_i32_0 = arith.constant 0 : i32
    %c0_i32_1 = arith.constant 0 : i32
    return %c0_i32, %c0_i32_0 : i32, i32
  }
  func.func @transform_3(%arg0: i32) -> (i32, i32) {
    %c0_i32 = arith.constant 0 : i32
    %c0_i32_0 = arith.constant 0 : i32
    %c0_i32_1 = arith.constant 0 : i32
    return %c0_i32, %c0_i32_0 : i32, i32
  }
  func.func @transform_4(%arg0: i32) -> (i32, i32) {
    %c0_i32 = arith.constant 0 : i32
    %c0_i32_0 = arith.constant 0 : i32
    %c0_i32_1 = arith.constant 0 : i32
    return %c0_i32, %c0_i32_0 : i32, i32
  }
  func.func @transform_5(%arg0: i32) -> (i32, i32) {
    %c0_i32 = arith.constant 0 : i32
    %c0_i32_0 = arith.constant 0 : i32
    %c0_i32_1 = arith.constant 0 : i32
    return %c0_i32, %c0_i32_0 : i32, i32
  }
  func.func @transform_6(%arg0: i32) -> (i32, i32) {
    %c0_i32 = arith.constant 0 : i32
    %c0_i32_0 = arith.constant 0 : i32
    %c0_i32_1 = arith.constant 0 : i32
    return %c0_i32, %c0_i32_0 : i32, i32
  }
  func.func @transform_7(%arg0: i32) -> (i32, i32) {
    %c0_i32 = arith.constant 0 : i32
    %c0_i32_0 = arith.constant 0 : i32
    %c0_i32_1 = arith.constant 0 : i32
    return %c0_i32, %c0_i32_0 : i32, i32
  }
  func.func @transform_8(%arg0: i32) -> (i32, i32) {
    %c0_i32 = arith.constant 0 : i32
    %c0_i32_0 = arith.constant 0 : i32
    %c0_i32_1 = arith.constant 0 : i32
    return %c0_i32, %c0_i32_0 : i32, i32
  }
  func.func @transform_9(%arg0: i32) -> (i32, i32) {
    %c0_i32 = arith.constant 0 : i32
    %c0_i32_0 = arith.constant 0 : i32
    return %arg0, %c0_i32 : i32, i32
  }
}

</mosaic_0001>

<llo_original>
// kernel: tpu_custom_call.1
$region0: #{tpu_custom_call.1}
  #allocation0 [shape = 'u32[]', space=smem, size = 0x4, offset = 0x4, fixed_abs, tag = 'smem constant byte address 0x4 - core index']
  #allocation1 [shape = 'u32[72,128]{1,0:T(1,128)}', space=vmem, size = 0x9000, scoped, tag = 'internal scratch']
  %s0 = inlined_call_operand.hbm [shape: bf16[8,128], index: 0, kind: input, shape index: {}]
  %s1 = inlined_call_operand.hbm [shape: bf16[128,128], index: 1, kind: input, shape index: {}]
  %s2 = inlined_call_operand.vmem [shape: f32[1,128], index: 2, kind: input, shape index: {}]
  %s3 = inlined_call_operand.hbm [shape: bf16[128,128], index: 3, kind: input, shape index: {}]
  %s4 = inlined_call_operand.vmem [shape: f32[1,128], index: 4, kind: input, shape index: {}]
  %s5 = inlined_call_operand.hbm [shape: bf16[128,128], index: 5, kind: input, shape index: {}]
  %s6 = inlined_call_operand.vmem [shape: f32[1,128], index: 6, kind: input, shape index: {}]
  %s7 = inlined_call_operand.hbm [shape: bf16[128,128], index: 7, kind: input, shape index: {}]
  %s8 = inlined_call_operand.vmem [shape: f32[1,128], index: 8, kind: input, shape index: {}]
  %s9 = inlined_call_operand.hbm [shape: f32[8,128], index: 9, kind: output, shape index: {}]
  %s10 = sld [smem:[#allocation0]]
  $region66: #{tpu_custom_call.1} parent=0
    _
  %s12 = ssub.s32 1, %s10
  %s13 = scalar_select 0, %s12, %s10
  $region1: #{tpu_custom_call.1} parent=0
    #allocation2 [shape = 'u8[2048]{0}', space=vmem, size = 0x800, scoped, tag = 'input window, operand 0, single buffered']
    #allocation3 [shape = 's32[1]{0}', space=sflag, size = 0x4, scoped, tag = 'scoped memory for tpu_custom_call.1']
    #allocation4 [shape = 's32[1]{0}', space=sflag, size = 0x4, scoped, tag = 'scoped memory for tpu_custom_call.1']
    #allocation5 [shape = 'u8[32768]{0}', space=vmem, size = 0x8000, scoped, tag = 'input window, operand 1, single buffered']
    #allocation6 [shape = 's32[1]{0}', space=sflag, size = 0x4, scoped, tag = 'scoped memory for tpu_custom_call.1']
    #allocation7 [shape = 'u8[32768]{0}', space=vmem, size = 0x8000, scoped, tag = 'input window, operand 3, single buffered']
    #allocation8 [shape = 'u8[32768]{0}', space=vmem, size = 0x8000, scoped, tag = 'input window, operand 5, single buffered']
    #allocation9 [shape = 's32[1]{0}', space=sflag, size = 0x4, scoped, tag = 'scoped memory for tpu_custom_call.1']
    #allocation10 [shape = 'u8[32768]{0}', space=vmem, size = 0x8000, scoped, tag = 'input window, operand 7, single buffered']
    #allocation11 [shape = 'u8[4096]{0}', space=vmem, size = 0x1000, scoped, tag = 'output window, operand 0, single buffered']
    %14 = vsyncpa [#allocation3], 0
    %15 = vsyncpa [#allocation6], 0
    %16 = vsyncpa [#allocation9], 0
    %17 = vsyncpa [#allocation4], 0
    // Predicated region
    $region2: #{tpu_custom_call.1} parent=1 // pred_check
      _
    $region3: #{tpu_custom_call.1} parent=1 // pred_check_branch
      %19 = sbr.rel (0) target = $region5
    $region4: #{tpu_custom_call.1} parent=1 // pred_region
      %21 = vsyncadd [#allocation3], 0
      %s23 = sshll.u32 %s0, 4
      %s24 = int_to_ptr.hbm [resolvable:$true] %s23
      %s25 = sshll.u32 [#allocation2], 4
      %s26 = int_to_ptr.vmem [resolvable:$true] %s25
      %28 = dma.hbm_to_vmem [thread:$0]  %s24, 64, %s26, [#allocation3]
    $region5: #{tpu_custom_call.1} parent=1 // pred_fallthru
      _
    // Predicated region
    $region6: #{tpu_custom_call.1} parent=1 // pred_check
      _
    $region7: #{tpu_custom_call.1} parent=1 // pred_check_branch
      %30 = sbr.rel (0) target = $region9
    $region8: #{tpu_custom_call.1} parent=1 // pred_region
      %32 = vsyncadd [#allocation6], 0
      %s33 = sshll.u32 %s1, 4
      %s34 = int_to_ptr.hbm [resolvable:$true] %s33
      %s35 = sshll.u32 [#allocation5], 4
      %s36 = int_to_ptr.vmem [resolvable:$true] %s35
      %41 = dma.hbm_to_vmem [thread:$0]  %s34, 1024, %s36, [#allocation6], 64, 64, 4
    $region9: #{tpu_custom_call.1} parent=1 // pred_fallthru
      _
    // Predicated region
    $region10: #{tpu_custom_call.1} parent=1 // pred_check
      _
    $region11: #{tpu_custom_call.1} parent=1 // pred_check_branch
      %43 = sbr.rel (0) target = $region13
    $region12: #{tpu_custom_call.1} parent=1 // pred_region
      _
    $region13: #{tpu_custom_call.1} parent=1 // pred_fallthru
      _
    // Predicated region
    $region14: #{tpu_custom_call.1} parent=1 // pred_check
      _
    $region15: #{tpu_custom_call.1} parent=1 // pred_check_branch
      %45 = sbr.rel (0) target = $region17
    $region16: #{tpu_custom_call.1} parent=1 // pred_region
      %47 = vsyncadd [#allocation6], 0
      %s48 = sshll.u32 %s3, 4
      %s49 = int_to_ptr.hbm [resolvable:$true] %s48
      %s50 = sshll.u32 [#allocation7], 4
      %s51 = int_to_ptr.vmem [resolvable:$true] %s50
      %56 = dma.hbm_to_vmem [thread:$0]  %s49, 1024, %s51, [#allocation6], 64, 64, 4
    $region17: #{tpu_custom_call.1} parent=1 // pred_fallthru
      _
    // Predicated region
    $region18: #{tpu_custom_call.1} parent=1 // pred_check
      _
    $region19: #{tpu_custom_call.1} parent=1 // pred_check_branch
      %58 = sbr.rel (0) target = $region21
    $region20: #{tpu_custom_call.1} parent=1 // pred_region
      _
    $region21: #{tpu_custom_call.1} parent=1 // pred_fallthru
      _
    // Predicated region
    $region22: #{tpu_custom_call.1} parent=1 // pred_check
      _
    $region23: #{tpu_custom_call.1} parent=1 // pred_check_branch
      %60 = sbr.rel (0) target = $region25
    $region24: #{tpu_custom_call.1} parent=1 // pred_region
      %62 = vsyncadd [#allocation9], 0
      %s63 = sshll.u32 %s5, 4
      %s64 = int_to_ptr.hbm [resolvable:$true] %s63
      %s65 = sshll.u32 [#allocation8], 4
      %s66 = int_to_ptr.vmem [resolvable:$true] %s65
      %71 = dma.hbm_to_vmem [thread:$0]  %s64, 1024, %s66, [#allocation9], 64, 64, 4
    $region25: #{tpu_custom_call.1} parent=1 // pred_fallthru
      _
    // Predicated region
    $region26: #{tpu_custom_call.1} parent=1 // pred_check
      _
    $region27: #{tpu_custom_call.1} parent=1 // pred_check_branch
      %73 = sbr.rel (0) target = $region29
    $region28: #{tpu_custom_call.1} parent=1 // pred_region
      _
    $region29: #{tpu_custom_call.1} parent=1 // pred_fallthru
      _
    // Predicated region
    $region30: #{tpu_custom_call.1} parent=1 // pred_check
      _
    $region31: #{tpu_custom_call.1} parent=1 // pred_check_branch
      %75 = sbr.rel (0) target = $region33
    $region32: #{tpu_custom_call.1} parent=1 // pred_region
      %77 = vsyncadd [#allocation9], 0
      %s78 = sshll.u32 %s7, 4
      %s79 = int_to_ptr.hbm [resolvable:$true] %s78
      %s80 = sshll.u32 [#allocation10], 4
      %s81 = int_to_ptr.vmem [resolvable:$true] %s80
      %86 = dma.hbm_to_vmem [thread:$0]  %s79, 1024, %s81, [#allocation9], 64, 64, 4
    $region33: #{tpu_custom_call.1} parent=1 // pred_fallthru
      _
    // Predicated region
    $region34: #{tpu_custom_call.1} parent=1 // pred_check
      _
    $region35: #{tpu_custom_call.1} parent=1 // pred_check_branch
      %88 = sbr.rel (0) target = $region37
    $region36: #{tpu_custom_call.1} parent=1 // pred_region
      _
    $region37: #{tpu_custom_call.1} parent=1 // pred_fallthru
      _
    // Predicated region
    $region38: #{tpu_custom_call.1} parent=1 // pred_check
      _
    $region39: #{tpu_custom_call.1} parent=1 // pred_check_branch
      %90 = sbr.rel (0) target = $region41
    $region40: #{tpu_custom_call.1} parent=1 // pred_region
      %92 = dma.done [#allocation3], 64
    $region41: #{tpu_custom_call.1} parent=1 // pred_fallthru
      _
    // Predicated region
    $region42: #{tpu_custom_call.1} parent=1 // pred_check
      _
    $region43: #{tpu_custom_call.1} parent=1 // pred_check_branch
      %94 = sbr.rel (0) target = $region45
    $region44: #{tpu_custom_call.1} parent=1 // pred_region
      %96 = dma.done [#allocation6], 1024
    $region45: #{tpu_custom_call.1} parent=1 // pred_fallthru
      _
    // Predicated region
    $region46: #{tpu_custom_call.1} parent=1 // pred_check
      _
    $region47: #{tpu_custom_call.1} parent=1 // pred_check_branch
      %98 = sbr.rel (0) target = $region49
    $region48: #{tpu_custom_call.1} parent=1 // pred_region
      %100 = dma.done [#allocation6], 1024
    $region49: #{tpu_custom_call.1} parent=1 // pred_fallthru
      _
    // Predicated region
    $region50: #{tpu_custom_call.1} parent=1 // pred_check
      _
    $region51: #{tpu_custom_call.1} parent=1 // pred_check_branch
      %102 = sbr.rel (0) target = $region53
    $region52: #{tpu_custom_call.1} parent=1 // pred_region
      %104 = dma.done [#allocation9], 1024
    $region53: #{tpu_custom_call.1} parent=1 // pred_fallthru
      _
    // Predicated region
    $region54: #{tpu_custom_call.1} parent=1 // pred_check
      _
    $region55: #{tpu_custom_call.1} parent=1 // pred_check_branch
      %106 = sbr.rel (0) target = $region57
    $region56: #{tpu_custom_call.1} parent=1 // pred_region
      %108 = dma.done [#allocation9], 1024
    $region57: #{tpu_custom_call.1} parent=1 // pred_fallthru
      _
    %v109 = vld [vmem:[#allocation2] sm:$0xf]
    %v110 = vld [vmem:[#allocation5] sm:$0xf]
    %v111 = vld [vmem:[#allocation5 + $0x4] sm:$0xf]
    %v112 = vld [vmem:[#allocation5 + $0x8] sm:$0xf]
    %v113 = vld [vmem:[#allocation5 + $0xc] sm:$0xf]
    %v114 = vld [vmem:[#allocation5 + $0x10] sm:$0xf]
    %v115 = vld [vmem:[#allocation5 + $0x14] sm:$0xf]
    %v116 = vld [vmem:[#allocation5 + $0x18] sm:$0xf]
    %v117 = vld [vmem:[#allocation5 + $0x1c] sm:$0xf]
    %v118 = vld [vmem:[#allocation5 + $0x20] sm:$0xf]
    %v119 = vld [vmem:[#allocation5 + $0x24] sm:$0xf]
    %v120 = vld [vmem:[#allocation5 + $0x28] sm:$0xf]
    %v121 = vld [vmem:[#allocation5 + $0x2c] sm:$0xf]
    %v122 = vld [vmem:[#allocation5 + $0x30] sm:$0xf]
    %v123 = vld [vmem:[#allocation5 + $0x34] sm:$0xf]
    %v124 = vld [vmem:[#allocation5 + $0x38] sm:$0xf]
    %v125 = vld [vmem:[#allocation5 + $0x3c] sm:$0xf]
    %v126 = vld [vmem:[%s2] sm:$0x1]
    %v128 = vperm.slane %v126, 0
    %v146 = vunpack.c.l.b16 %v110
    %v147 = vunpack.c.l.b16 %v111
    %v148 = vunpack.c.l.b16 %v112
    %v149 = vunpack.c.l.b16 %v113
    %v150 = vunpack.c.l.b16 %v114
    %v151 = vunpack.c.l.b16 %v115
    %v152 = vunpack.c.l.b16 %v116
    %v153 = vunpack.c.l.b16 %v117
    %v154 = vunpack.c.l.b16 %v118
    %v155 = vunpack.c.l.b16 %v119
    %v156 = vunpack.c.l.b16 %v120
    %v157 = vunpack.c.l.b16 %v121
    %v158 = vunpack.c.l.b16 %v122
    %v159 = vunpack.c.l.b16 %v123
    %v160 = vunpack.c.l.b16 %v124
    %v161 = vunpack.c.l.b16 %v125
    %v162 = vpack.c.b16 %v147, %v146
    %v163 = vpack.c.b16 %v149, %v148
    %v164 = vpack.c.b16 %v151, %v150
    %v165 = vpack.c.b16 %v153, %v152
    %v166 = vpack.c.b16 %v155, %v154
    %v167 = vpack.c.b16 %v157, %v156
    %v168 = vpack.c.b16 %v159, %v158
    %v169 = vpack.c.b16 %v161, %v160
    %178 = vmatpush.bf16.msra.mxu0 %v169
    %179 = vmatpush.bf16.msra.mxu0 %v168
    %180 = vmatpush.bf16.msra.mxu0 %v167
    %181 = vmatpush.bf16.msra.mxu0 %v166
    %182 = vmatpush.bf16.msra.mxu0 %v165
    %183 = vmatpush.bf16.msra.mxu0 %v164
    %184 = vmatpush.bf16.msra.mxu0 %v163
    %185 = vmatpush.bf16.msra.mxu0 %v162
    %186 = vmatmul.bf16.gmra.mxu0 %v109
    %v187 = vpop.f32.mrf.mxu0
    %v188 = vadd.f32 %v128, %v187
    %v189 = vpop.f32.mrf.mxu0
    %190 = vdwg.mxu0
    %vm191 = vcmp.gt.f32.partialorder %v188, 20.0
    %v192 = vmax.f32 %v188, 0.0
    %v193 = vand.u32 2147483647, %v188
    %v194 = vsub.f32 0.0, %v193
    %v195 = vmul.f32 %v194, 1.442695
    %v196 = vpow.pop %v195
    %v197 = vadd.f32 %v196, 1.0
    %v198 = vlog2.pop %v197
    %v199 = vmul.f32 %v198, 0.6931472
    %v200 = vmul.f32 -0.5, %v196
    %v201 = vadd.f32 %v200, 1.0
    %v202 = vmul.f32 %v201, %v196
    %v203 = vand.u32 2147483647, %v196
    %vm204 = vcmp.lt.f32.partialorder %v203, 0.0004427343
    %v205 = vsel %vm204, %v202, %v199
    %v206 = vadd.f32 %v192, %v205
    %v207 = vsel %vm191, %v188, %v206
    %v208 = vpack.c.bf16 %v207, %v207
    %v209 = vld [vmem:[#allocation7] sm:$0xf]
    %v210 = vld [vmem:[#allocation7 + $0x4] sm:$0xf]
    %v211 = vld [vmem:[#allocation7 + $0x8] sm:$0xf]
    %v212 = vld [vmem:[#allocation7 + $0xc] sm:$0xf]
    %v213 = vld [vmem:[#allocation7 + $0x10] sm:$0xf]
    %v214 = vld [vmem:[#allocation7 + $0x14] sm:$0xf]
    %v215 = vld [vmem:[#allocation7 + $0x18] sm:$0xf]
    %v216 = vld [vmem:[#allocation7 + $0x1c] sm:$0xf]
    %v217 = vld [vmem:[#allocation7 + $0x20] sm:$0xf]
    %v218 = vld [vmem:[#allocation7 + $0x24] sm:$0xf]
    %v219 = vld [vmem:[#allocation7 + $0x28] sm:$0xf]
    %v220 = vld [vmem:[#allocation7 + $0x2c] sm:$0xf]
    %v221 = vld [vmem:[#allocation7 + $0x30] sm:$0xf]
    %v222 = vld [vmem:[#allocation7 + $0x34] sm:$0xf]
    %v223 = vld [vmem:[#allocation7 + $0x38] sm:$0xf]
    %v224 = vld [vmem:[#allocation7 + $0x3c] sm:$0xf]
    %v225 = vld [vmem:[%s4] sm:$0x1]
    %v227 = vperm.slane %v225, 0
    %v245 = vunpack.c.l.b16 %v209
    %v246 = vunpack.c.l.b16 %v210
    %v247 = vunpack.c.l.b16 %v211
    %v248 = vunpack.c.l.b16 %v212
    %v249 = vunpack.c.l.b16 %v213
    %v250 = vunpack.c.l.b16 %v214
    %v251 = vunpack.c.l.b16 %v215
    %v252 = vunpack.c.l.b16 %v216
    %v253 = vunpack.c.l.b16 %v217
    %v254 = vunpack.c.l.b16 %v218
    %v255 = vunpack.c.l.b16 %v219
    %v256 = vunpack.c.l.b16 %v220
    %v257 = vunpack.c.l.b16 %v221
    %v258 = vunpack.c.l.b16 %v222
    %v259 = vunpack.c.l.b16 %v223
    %v260 = vunpack.c.l.b16 %v224
    %v261 = vpack.c.b16 %v246, %v245
    %v262 = vpack.c.b16 %v248, %v247
    %v263 = vpack.c.b16 %v250, %v249
    %v264 = vpack.c.b16 %v252, %v251
    %v265 = vpack.c.b16 %v254, %v253
    %v266 = vpack.c.b16 %v256, %v255
    %v267 = vpack.c.b16 %v258, %v257
    %v268 = vpack.c.b16 %v260, %v259
    %277 = vmatpush.bf16.msra.mxu0 %v268
    %278 = vmatpush.bf16.msra.mxu0 %v267
    %279 = vmatpush.bf16.msra.mxu0 %v266
    %280 = vmatpush.bf16.msra.mxu0 %v265
    %281 = vmatpush.bf16.msra.mxu0 %v264
    %282 = vmatpush.bf16.msra.mxu0 %v263
    %283 = vmatpush.bf16.msra.mxu0 %v262
    %284 = vmatpush.bf16.msra.mxu0 %v261
    %285 = vmatmul.bf16.gmra.mxu0 %v208
    %v286 = vpop.f32.mrf.mxu0
    %v287 = vadd.f32 %v227, %v286
    %v288 = vpop.f32.mrf.mxu0
    %289 = vdwg.mxu0
    %vm290 = vcmp.gt.f32.partialorder %v287, 20.0
    %v291 = vmax.f32 %v287, 0.0
    %v292 = vand.u32 2147483647, %v287
    %v293 = vsub.f32 0.0, %v292
    %v294 = vmul.f32 %v293, 1.442695
    %v295 = vpow.pop %v294
    %v296 = vadd.f32 %v295, 1.0
    %v297 = vlog2.pop %v296
    %v298 = vmul.f32 %v297, 0.6931472
    %v299 = vmul.f32 -0.5, %v295
    %v300 = vadd.f32 %v299, 1.0
    %v301 = vmul.f32 %v300, %v295
    %v302 = vand.u32 2147483647, %v295
    %vm303 = vcmp.lt.f32.partialorder %v302, 0.0004427343
    %v304 = vsel %vm303, %v301, %v298
    %v305 = vadd.f32 %v291, %v304
    %v306 = vsel %vm290, %v287, %v305
    %v307 = vpack.c.bf16 %v306, %v306
    %v308 = vld [vmem:[#allocation8] sm:$0xf]
    %v309 = vld [vmem:[#allocation8 + $0x4] sm:$0xf]
    %v310 = vld [vmem:[#allocation8 + $0x8] sm:$0xf]
    %v311 = vld [vmem:[#allocation8 + $0xc] sm:$0xf]
    %v312 = vld [vmem:[#allocation8 + $0x10] sm:$0xf]
    %v313 = vld [vmem:[#allocation8 + $0x14] sm:$0xf]
    %v314 = vld [vmem:[#allocation8 + $0x18] sm:$0xf]
    %v315 = vld [vmem:[#allocation8 + $0x1c] sm:$0xf]
    %v316 = vld [vmem:[#allocation8 + $0x20] sm:$0xf]
    %v317 = vld [vmem:[#allocation8 + $0x24] sm:$0xf]
    %v318 = vld [vmem:[#allocation8 + $0x28] sm:$0xf]
    %v319 = vld [vmem:[#allocation8 + $0x2c] sm:$0xf]
    %v320 = vld [vmem:[#allocation8 + $0x30] sm:$0xf]
    %v321 = vld [vmem:[#allocation8 + $0x34] sm:$0xf]
    %v322 = vld [vmem:[#allocation8 + $0x38] sm:$0xf]
    %v323 = vld [vmem:[#allocation8 + $0x3c] sm:$0xf]
    %v324 = vld [vmem:[%s6] sm:$0x1]
    %v326 = vperm.slane %v324, 0
    %v344 = vunpack.c.l.b16 %v308
    %v345 = vunpack.c.l.b16 %v309
    %v346 = vunpack.c.l.b16 %v310
    %v347 = vunpack.c.l.b16 %v311
    %v348 = vunpack.c.l.b16 %v312
    %v349 = vunpack.c.l.b16 %v313
    %v350 = vunpack.c.l.b16 %v314
    %v351 = vunpack.c.l.b16 %v315
    %v352 = vunpack.c.l.b16 %v316
    %v353 = vunpack.c.l.b16 %v317
    %v354 = vunpack.c.l.b16 %v318
    %v355 = vunpack.c.l.b16 %v319
    %v356 = vunpack.c.l.b16 %v320
    %v357 = vunpack.c.l.b16 %v321
    %v358 = vunpack.c.l.b16 %v322
    %v359 = vunpack.c.l.b16 %v323
    %v360 = vpack.c.b16 %v345, %v344
    %v361 = vpack.c.b16 %v347, %v346
    %v362 = vpack.c.b16 %v349, %v348
    %v363 = vpack.c.b16 %v351, %v350
    %v364 = vpack.c.b16 %v353, %v352
    %v365 = vpack.c.b16 %v355, %v354
    %v366 = vpack.c.b16 %v357, %v356
    %v367 = vpack.c.b16 %v359, %v358
    %376 = vmatpush.bf16.msra.mxu0 %v367
    %377 = vmatpush.bf16.msra.mxu0 %v366
    %378 = vmatpush.bf16.msra.mxu0 %v365
    %379 = vmatpush.bf16.msra.mxu0 %v364
    %380 = vmatpush.bf16.msra.mxu0 %v363
    %381 = vmatpush.bf16.msra.mxu0 %v362
    %382 = vmatpush.bf16.msra.mxu0 %v361
    %383 = vmatpush.bf16.msra.mxu0 %v360
    %384 = vmatmul.bf16.gmra.mxu0 %v307
    %v385 = vpop.f32.mrf.mxu0
    %v386 = vadd.f32 %v326, %v385
    %v387 = vpop.f32.mrf.mxu0
    %388 = vdwg.mxu0
    %vm389 = vcmp.gt.f32.partialorder %v386, 20.0
    %v390 = vmax.f32 %v386, 0.0
    %v391 = vand.u32 2147483647, %v386
    %v392 = vsub.f32 0.0, %v391
    %v393 = vmul.f32 %v392, 1.442695
    %v394 = vpow.pop %v393
    %v395 = vadd.f32 %v394, 1.0
    %v396 = vlog2.pop %v395
    %v397 = vmul.f32 %v396, 0.6931472
    %v398 = vmul.f32 -0.5, %v394
    %v399 = vadd.f32 %v398, 1.0
    %v400 = vmul.f32 %v399, %v394
    %v401 = vand.u32 2147483647, %v394
    %vm402 = vcmp.lt.f32.partialorder %v401, 0.0004427343
    %v403 = vsel %vm402, %v400, %v397
    %v404 = vadd.f32 %v390, %v403
    %v405 = vsel %vm389, %v386, %v404
    %v406 = vpack.c.bf16 %v405, %v405
    %v407 = vld [vmem:[#allocation10] sm:$0xf]
    %v408 = vld [vmem:[#allocation10 + $0x4] sm:$0xf]
    %v409 = vld [vmem:[#allocation10 + $0x8] sm:$0xf]
    %v410 = vld [vmem:[#allocation10 + $0xc] sm:$0xf]
    %v411 = vld [vmem:[#allocation10 + $0x10] sm:$0xf]
    %v412 = vld [vmem:[#allocation10 + $0x14] sm:$0xf]
    %v413 = vld [vmem:[#allocation10 + $0x18] sm:$0xf]
    %v414 = vld [vmem:[#allocation10 + $0x1c] sm:$0xf]
    %v415 = vld [vmem:[#allocation10 + $0x20] sm:$0xf]
    %v416 = vld [vmem:[#allocation10 + $0x24] sm:$0xf]
    %v417 = vld [vmem:[#allocation10 + $0x28] sm:$0xf]
    %v418 = vld [vmem:[#allocation10 + $0x2c] sm:$0xf]
    %v419 = vld [vmem:[#allocation10 + $0x30] sm:$0xf]
    %v420 = vld [vmem:[#allocation10 + $0x34] sm:$0xf]
    %v421 = vld [vmem:[#allocation10 + $0x38] sm:$0xf]
    %v422 = vld [vmem:[#allocation10 + $0x3c] sm:$0xf]
    %v423 = vld [vmem:[%s8] sm:$0x1]
    %v425 = vperm.slane %v423, 0
    %v443 = vunpack.c.l.b16 %v407
    %v444 = vunpack.c.l.b16 %v408
    %v445 = vunpack.c.l.b16 %v409
    %v446 = vunpack.c.l.b16 %v410
    %v447 = vunpack.c.l.b16 %v411
    %v448 = vunpack.c.l.b16 %v412
    %v449 = vunpack.c.l.b16 %v413
    %v450 = vunpack.c.l.b16 %v414
    %v451 = vunpack.c.l.b16 %v415
    %v452 = vunpack.c.l.b16 %v416
    %v453 = vunpack.c.l.b16 %v417
    %v454 = vunpack.c.l.b16 %v418
    %v455 = vunpack.c.l.b16 %v419
    %v456 = vunpack.c.l.b16 %v420
    %v457 = vunpack.c.l.b16 %v421
    %v458 = vunpack.c.l.b16 %v422
    %v459 = vpack.c.b16 %v444, %v443
    %v460 = vpack.c.b16 %v446, %v445
    %v461 = vpack.c.b16 %v448, %v447
    %v462 = vpack.c.b16 %v450, %v449
    %v463 = vpack.c.b16 %v452, %v451
    %v464 = vpack.c.b16 %v454, %v453
    %v465 = vpack.c.b16 %v456, %v455
    %v466 = vpack.c.b16 %v458, %v457
    %475 = vmatpush.bf16.msra.mxu0 %v466
    %476 = vmatpush.bf16.msra.mxu0 %v465
    %477 = vmatpush.bf16.msra.mxu0 %v464
    %478 = vmatpush.bf16.msra.mxu0 %v463
    %479 = vmatpush.bf16.msra.mxu0 %v462
    %480 = vmatpush.bf16.msra.mxu0 %v461
    %481 = vmatpush.bf16.msra.mxu0 %v460
    %482 = vmatpush.bf16.msra.mxu0 %v459
    %483 = vmatmul.bf16.gmra.mxu0 %v406
    %v484 = vpop.f32.mrf.mxu0
    %v485 = vadd.f32 %v425, %v484
    %v486 = vpop.f32.mrf.mxu0
    %487 = vdwg.mxu0
    %488 = vst [vmem:[#allocation11] sm:$0xff] %v485
    // Predicated region
    $region58: #{tpu_custom_call.1} parent=1 // pred_check
      _
    $region59: #{tpu_custom_call.1} parent=1 // pred_check_branch
      %490 = sbr.rel (0) target = $region61
    $region60: #{tpu_custom_call.1} parent=1 // pred_region
      %492 = vsyncadd [#allocation4], 0
      %s494 = sshll.u32 [#allocation11], 4
      %s495 = int_to_ptr.vmem [resolvable:$true] %s494
      %s496 = sshll.u32 %s9, 4
      %s497 = int_to_ptr.hbm [resolvable:$true] %s496
      %499 = dma.vmem_to_hbm [thread:$0]  %s495, 128, %s497, [#allocation4]
    $region61: #{tpu_custom_call.1} parent=1 // pred_fallthru
      _
    // Predicated region
    $region62: #{tpu_custom_call.1} parent=1 // pred_check
      _
    $region63: #{tpu_custom_call.1} parent=1 // pred_check_branch
      %501 = sbr.rel (0) target = $region65
    $region64: #{tpu_custom_call.1} parent=1 // pred_region
      %503 = dma.done [#allocation4], 128
    $region65: #{tpu_custom_call.1} parent=1 // pred_fallthru
      _
    %504 = vsyncpa [#allocation3], 1
    %505 = vsyncpa [#allocation6], 1
    %506 = vsyncpa [#allocation9], 1
    %507 = vsyncpa [#allocation4], 1

</llo_original>
